<compile_context>
chip_gen: v5e
topology: v5e:2x2
jax: 0.10.0
libtpu: 0.0.40
codegen_flags: <defaults>
</compile_context>

<pallas_src>
import functools

import numpy as np
import jax
import jax.numpy as jnp
from jax.experimental import pallas as pl
from jax.experimental.pallas import tpu as pltpu


def _round_up(x, m):
    return ((x + m - 1) // m) * m


# ---------------------------------------------------------------------------
# Pallas kernel: fused BiLSTM (1 step) + fc
# ---------------------------------------------------------------------------
def _textrcnn_kernel(x_ref, wg_ref, bg_ref, wfc_ref, bfc_ref, out_ref, *, group):
    # x_ref   : (TB, D)   bf16  input features for this batch tile
    # wg_ref  : (D, 3G)   bf16  fused gate weights [i_f|i_b|pad , g_f|g_b|pad , o_f|o_b|pad]
    # bg_ref  : (1, 3G)   f32   fused gate bias (b_ih + b_hh), pad lanes == 0
    # wfc_ref : (G, Nc)   bf16  final fc weight (rows = [fwd | bwd | zero pad])
    # bfc_ref : (1, Nc)   f32
    # out_ref : (TB, Nc)  f32
    x = x_ref[...]                                          # (TB, D) bf16

    # One fused MXU matmul for all 6 live gates of both LSTM directions,
    # accumulated in f32.
    gates = (jnp.dot(x, wg_ref[...], preferred_element_type=jnp.float32)
             + bg_ref[...])                                 # (TB, 3G) f32

    def _sigmoid(v):
        # sigmoid(v) == 0.5 * tanh(0.5 * v) + 0.5  -> single EUP op per element
        return 0.5 * jnp.tanh(0.5 * v) + 0.5

    G = group                                               # lane-aligned group width
    i = _sigmoid(gates[:, 0:G])                             # (TB, G) [fwd | bwd | pad]
    g = jnp.tanh(gates[:, G:2 * G])
    o = _sigmoid(gates[:, 2 * G:3 * G])
    h = o * jnp.tanh(i * g)                                 # (TB, G); pad lanes are exactly 0

    out_ref[...] = (jnp.dot(h.astype(jnp.bfloat16), wfc_ref[...],
                            preferred_element_type=jnp.float32)
                    + bfc_ref[...])                         # (TB, Nc) f32


# ---------------------------------------------------------------------------
# One-time weight packing (do NOT call per forward pass)
# ---------------------------------------------------------------------------
def pack_params(p):
    """Pack PyTorch-layout LSTM/Linear params into the fused kernel layout.

    Forget gate rows and weight_hh_* are dropped: they are exactly zero-effect
    because seq_len == 1 and h0 == c0 == 0.
    """
    H = p["b_ih_f"].shape[0] // 4
    D = p["w_ih_f"].shape[1]
    Nc = p["fc_b"].shape[0]
    G = _round_up(2 * H, 128)            # lane-aligned [fwd|bwd] group width

    def rows(w, s):                      # gate s out of PyTorch [i, f, g, o] stacking
        return w[s * H:(s + 1) * H]

    def bias(d, s):                      # fused bias for gate s of direction d
        return p[f"b_ih_{d}"][s * H:(s + 1) * H] + p[f"b_hh_{d}"][s * H:(s + 1) * H]

    def group_w(s):                      # (D, G): [fwd | bwd | zero pad]
        w = jnp.concatenate([rows(p["w_ih_f"], s), rows(p["w_ih_b"], s)], axis=0).T
        return jnp.pad(w, ((0, 0), (0, G - 2 * H)))

    def group_b(s):                      # (G,)
        b = jnp.concatenate([bias("f", s), bias("b", s)])
        return jnp.pad(b, (0, G - 2 * H))

    wg = jnp.concatenate([group_w(0), group_w(2), group_w(3)], axis=1)   # (D, 3G) [i|g|o]
    bg = jnp.concatenate([group_b(0), group_b(2), group_b(3)]).reshape(1, 3 * G)
    wfc = jnp.pad(p["fc_w"].T, ((0, G - 2 * H), (0, 0)))                 # (G, Nc), pad rows = 0
    bfc = p["fc_b"].reshape(1, Nc)

    return {
        "wg": jax.device_put(wg.astype(jnp.bfloat16)),
        "bg": jax.device_put(bg.astype(jnp.float32)),
        "wfc": jax.device_put(wfc.astype(jnp.bfloat16)),
        "bfc": jax.device_put(bfc.astype(jnp.float32)),
        "group": G,
        "hidden": H,
        "input_size": D,
        "num_classes": Nc,
    }


# ---------------------------------------------------------------------------
# Wrapper: pallas_call
# ---------------------------------------------------------------------------
def textrcnn_forward(x, packed):
    """x: (N, D) float32. packed: output of pack_params()."""
    N, D = x.shape
    assert D == packed["input_size"]
    G = packed["group"]
    Nc = packed["num_classes"]

    # Batch tile: big enough to amortize the ~0.35 us per-grid-step cost,
    # capped at 2048 rows so double-buffered tiles + f32 temps stay inside
    # v5e's 16 MiB default scoped VMEM (and well under v7x's 64 MiB physical).
    TB = N if N <= 2048 else 2048
    steps = pl.cdiv(N, TB)

    x_spec_kwargs = {}
    if steps >= 4:
        # Deeper buffering on the only streaming input once the grid is long
        # enough for DMA-issue jitter to show; weights stay default (resident).
        x_spec_kwargs["pipeline_mode"] = pl.Buffered(3)

    kernel = functools.partial(_textrcnn_kernel, group=G)
    return pl.pallas_call(
        kernel,
        out_shape=jax.ShapeDtypeStruct((N, Nc), jnp.float32),
        grid=(steps,),
        in_specs=[
            pl.BlockSpec((TB, D), lambda b: (b, 0), **x_spec_kwargs),
            pl.BlockSpec((D, 3 * G), lambda b: (0, 0)),
            pl.BlockSpec((1, 3 * G), lambda b: (0, 0)),
            pl.BlockSpec((G, Nc), lambda b: (0, 0)),
            pl.BlockSpec((1, Nc), lambda b: (0, 0)),
        ],
        out_specs=pl.BlockSpec((TB, Nc), lambda b: (b, 0)),
        compiler_params=pltpu.CompilerParams(
            dimension_semantics=("parallel",)),
    )(x.astype(jnp.bfloat16), packed["wg"], packed["bg"],
      packed["wfc"], packed["bfc"])


# ---------------------------------------------------------------------------
# Pure-JAX reference (literal PyTorch semantics, for correctness check)
# ---------------------------------------------------------------------------
def _textrcnn_ref(x, p):
    H = p["b_ih_f"].shape[0] // 4

    def lstm_step(w_ih, w_hh, b_ih, b_hh):
        h0 = jnp.zeros((x.shape[0], H), jnp.float32)
        c0 = jnp.zeros((x.shape[0], H), jnp.float32)
        gates = x @ w_ih.T + b_ih + h0 @ w_hh.T + b_hh
        i = jax.nn.sigmoid(gates[:, 0:H])
        f = jax.nn.sigmoid(gates[:, H:2 * H])
        g = jnp.tanh(gates[:, 2 * H:3 * H])
        o = jax.nn.sigmoid(gates[:, 3 * H:4 * H])
        c = f * c0 + i * g
        return o * jnp.tanh(c)

    h_f = lstm_step(p["w_ih_f"], p["w_hh_f"], p["b_ih_f"], p["b_hh_f"])
    h_b = lstm_step(p["w_ih_b"], p["w_hh_b"], p["b_ih_b"], p["b_hh_b"])
    # seq_len == 1: lstm_out[:, -1, :H] == h_f and lstm_out[:, 0, H:] == h_b.
    h = jnp.concatenate([h_f, h_b], axis=1)
    return h @ p["fc_w"].T + p["fc_b"]


# ---------------------------------------------------------------------------
def init_params(key, D, H, Nc):
    ks = jax.random.split(key, 10)
    f32 = jnp.float32
    s = 1.0 / np.sqrt(H)
    u = lambda k, shape: jax.random.uniform(k, shape, f32, -s, s)
    return {
        # forward direction
        "w_ih_f": u(ks[0], (4 * H, D)),
        "w_hh_f": u(ks[1], (4 * H, H)),   # mathematically unused (seq_len==1, h0==0)
        "b_ih_f": u(ks[2], (4 * H,)),
        "b_hh_f": u(ks[3], (4 * H,)),
        # backward direction
        "w_ih_b": u(ks[4], (4 * H, D)),
        "w_hh_b": u(ks[5], (4 * H, H)),   # mathematically unused (seq_len==1, h0==0)
        "b_ih_b": u(ks[6], (4 * H,)),
        "b_hh_b": u(ks[7], (4 * H,)),
        # final classifier
        "fc_w": u(ks[8], (Nc, 2 * H)),
        "fc_b": u(ks[9], (Nc,)),
    }


if __name__ == "__main__":
    N = 2            # batch
    D = 64           # input_size
    H = 32           # hidden_size
    Nc = 5           # num_classes

    key = jax.random.PRNGKey(0)
    kx, kp = jax.random.split(key)
    x = jax.random.normal(kx, (N, D), jnp.float32)
    params = init_params(kp, D, H, Nc)

    packed = pack_params(params)               # one-time weight packing
    out = textrcnn_forward(x, packed)
    jax.block_until_ready(out)

    out_ref = _textrcnn_ref(x, params)
    np.testing.assert_allclose(np.asarray(out), np.asarray(out_ref),
                               rtol=2e-2, atol=2e-2)

    print("KERNEL_OK")
</pallas_src>

<mosaic_0001>
module attributes {stable_mosaic.version = 11 : i64} {
  func.func @_textrcnn_kernel(%arg0: i32, %arg1: memref<2x64xbf16, #tpu.memory_space<vmem>>, %arg2: memref<64x384xbf16, #tpu.memory_space<vmem>>, %arg3: memref<1x384xf32, #tpu.memory_space<vmem>>, %arg4: memref<128x5xbf16, #tpu.memory_space<vmem>>, %arg5: memref<1x5xf32, #tpu.memory_space<vmem>>, %arg6: memref<2x5xf32, #tpu.memory_space<vmem>>) attributes {dimension_semantics = [#tpu.dimension_semantics<parallel>], iteration_bounds = array<i64: 1>, scalar_prefetch = 0 : i64, scratch_operands = 0 : i64, tpu.core_type = #tpu.core_type<tc>, window_params = [{transform_indices = @transform_0, window_bounds = array<i64: 2, 64>}, {pipeline_mode = #tpu.pipeline_mode<synchronous>, transform_indices = @transform_1, window_bounds = array<i64: 64, 384>}, {pipeline_mode = #tpu.pipeline_mode<synchronous>, transform_indices = @transform_2, window_bounds = array<i64: 1, 384>}, {pipeline_mode = #tpu.pipeline_mode<synchronous>, transform_indices = @transform_3, window_bounds = array<i64: 128, 5>}, {pipeline_mode = #tpu.pipeline_mode<synchronous>, transform_indices = @transform_4, window_bounds = array<i64: 1, 5>}, {transform_indices = @transform_5, window_bounds = array<i64: 2, 5>}]} {
    %c0 = arith.constant 0 : index
    %c0_0 = arith.constant 0 : index
    %0 = vector.load %arg1[%c0, %c0_0] : memref<2x64xbf16, #tpu.memory_space<vmem>>, vector<2x64xbf16>
    %c0_1 = arith.constant 0 : index
    %c0_2 = arith.constant 0 : index
    %1 = vector.load %arg2[%c0_1, %c0_2] : memref<64x384xbf16, #tpu.memory_space<vmem>>, vector<64x384xbf16>
    %cst = arith.constant dense<0.000000e+00> : vector<2x384xf32>
    %2 = tpu.matmul %0, %1, %cst {dimension_numbers = #tpu.dot_dimension_numbers<[1], [0], [0], [1], [0, 0, 1, 1], [], []>} : vector<2x64xbf16>, vector<64x384xbf16>, vector<2x384xf32> -> vector<2x384xf32>
    %c0_3 = arith.constant 0 : index
    %c0_4 = arith.constant 0 : index
    %3 = vector.load %arg3[%c0_3, %c0_4] : memref<1x384xf32, #tpu.memory_space<vmem>>, vector<1x384xf32>
    %4 = vector.broadcast %3 : vector<1x384xf32> to vector<2x384xf32>
    %5 = arith.addf %2, %4 : vector<2x384xf32>
    %6 = vector.extract_strided_slice %5 {offsets = [0, 0], sizes = [2, 128], strides = [1, 1]} : vector<2x384xf32> to vector<2x128xf32>
    %cst_5 = arith.constant 5.000000e-01 : f32
    %7 = vector.broadcast %cst_5 : f32 to vector<2x128xf32>
    %8 = arith.mulf %7, %6 : vector<2x128xf32>
    %9 = math.tanh %8 : vector<2x128xf32>
    %cst_6 = arith.constant 5.000000e-01 : f32
    %10 = vector.broadcast %cst_6 : f32 to vector<2x128xf32>
    %11 = arith.mulf %10, %9 : vector<2x128xf32>
    %cst_7 = arith.constant 5.000000e-01 : f32
    %12 = vector.broadcast %cst_7 : f32 to vector<2x128xf32>
    %13 = arith.addf %11, %12 : vector<2x128xf32>
    %14 = vector.extract_strided_slice %5 {offsets = [0, 128], sizes = [2, 128], strides = [1, 1]} : vector<2x384xf32> to vector<2x128xf32>
    %15 = math.tanh %14 : vector<2x128xf32>
    %16 = vector.extract_strided_slice %5 {offsets = [0, 256], sizes = [2, 128], strides = [1, 1]} : vector<2x384xf32> to vector<2x128xf32>
    %cst_8 = arith.constant 5.000000e-01 : f32
    %17 = vector.broadcast %cst_8 : f32 to vector<2x128xf32>
    %18 = arith.mulf %17, %16 : vector<2x128xf32>
    %19 = math.tanh %18 : vector<2x128xf32>
    %cst_9 = arith.constant 5.000000e-01 : f32
    %20 = vector.broadcast %cst_9 : f32 to vector<2x128xf32>
    %21 = arith.mulf %20, %19 : vector<2x128xf32>
    %cst_10 = arith.constant 5.000000e-01 : f32
    %22 = vector.broadcast %cst_10 : f32 to vector<2x128xf32>
    %23 = arith.addf %21, %22 : vector<2x128xf32>
    %24 = arith.mulf %13, %15 : vector<2x128xf32>
    %25 = math.tanh %24 : vector<2x128xf32>
    %26 = arith.mulf %23, %25 : vector<2x128xf32>
    %27 = arith.truncf %26 : vector<2x128xf32> to vector<2x128xbf16>
    %c0_11 = arith.constant 0 : index
    %c0_12 = arith.constant 0 : index
    %28 = vector.load %arg4[%c0_11, %c0_12] : memref<128x5xbf16, #tpu.memory_space<vmem>>, vector<128x5xbf16>
    %cst_13 = arith.constant dense<0.000000e+00> : vector<2x5xf32>
    %29 = tpu.matmul %27, %28, %cst_13 {dimension_numbers = #tpu.dot_dimension_numbers<[1], [0], [0], [1], [0, 0, 1, 1], [], []>} : vector<2x128xbf16>, vector<128x5xbf16>, vector<2x5xf32> -> vector<2x5xf32>
    %c0_14 = arith.constant 0 : index
    %c0_15 = arith.constant 0 : index
    %30 = vector.load %arg5[%c0_14, %c0_15] : memref<1x5xf32, #tpu.memory_space<vmem>>, vector<1x5xf32>
    %31 = vector.broadcast %30 : vector<1x5xf32> to vector<2x5xf32>
    %32 = arith.addf %29, %31 : vector<2x5xf32>
    %c0_16 = arith.constant 0 : index
    %c0_17 = arith.constant 0 : index
    %33 = vector.load %arg6[%c0_16, %c0_17] : memref<2x5xf32, #tpu.memory_space<vmem>>, vector<2x5xf32>
    tpu.vector_store %arg6[%c0_16, %c0_17], %32 {strides = array<i32>} : memref<2x5xf32, #tpu.memory_space<vmem>>, vector<2x5xf32>,
    return
  }
  func.func @transform_0(%arg0: i32) -> (i32, i32) {
    %c0_i32 = arith.constant 0 : i32
    %c0_i32_0 = arith.constant 0 : i32
    return %arg0, %c0_i32 : i32, i32
  }
  func.func @transform_1(%arg0: i32) -> (i32, i32) {
    %c0_i32 = arith.constant 0 : i32
    %c0_i32_0 = arith.constant 0 : i32
    %c0_i32_1 = arith.constant 0 : i32
    return %c0_i32, %c0_i32_0 : i32, i32
  }
  func.func @transform_2(%arg0: i32) -> (i32, i32) {
    %c0_i32 = arith.constant 0 : i32
    %c0_i32_0 = arith.constant 0 : i32
    %c0_i32_1 = arith.constant 0 : i32
    return %c0_i32, %c0_i32_0 : i32, i32
  }
  func.func @transform_3(%arg0: i32) -> (i32, i32) {
    %c0_i32 = arith.constant 0 : i32
    %c0_i32_0 = arith.constant 0 : i32
    %c0_i32_1 = arith.constant 0 : i32
    return %c0_i32, %c0_i32_0 : i32, i32
  }
  func.func @transform_4(%arg0: i32) -> (i32, i32) {
    %c0_i32 = arith.constant 0 : i32
    %c0_i32_0 = arith.constant 0 : i32
    %c0_i32_1 = arith.constant 0 : i32
    return %c0_i32, %c0_i32_0 : i32, i32
  }
  func.func @transform_5(%arg0: i32) -> (i32, i32) {
    %c0_i32 = arith.constant 0 : i32
    %c0_i32_0 = arith.constant 0 : i32
    return %arg0, %c0_i32 : i32, i32
  }
}

</mosaic_0001>

<llo_original>
// kernel: tpu_custom_call.1
$region0: #{tpu_custom_call.1}
  #allocation0 [shape = 'u32[]', space=smem, size = 0x4, offset = 0x4, fixed_abs, tag = 'smem constant byte address 0x4 - core index']
  #allocation1 [shape = 'u32[72,128]{1,0:T(1,128)}', space=vmem, size = 0x9000, scoped, tag = 'internal scratch']
  %s0 = inlined_call_operand.vmem [shape: bf16[2,64], index: 0, kind: input, shape index: {}]
  %s1 = inlined_call_operand.hbm [shape: bf16[64,384], index: 1, kind: input, shape index: {}]
  %s2 = inlined_call_operand.vmem [shape: f32[1,384], index: 2, kind: input, shape index: {}]
  %s3 = inlined_call_operand.vmem [shape: bf16[128,5], index: 3, kind: input, shape index: {}]
  %s4 = inlined_call_operand.vmem [shape: f32[1,5], index: 4, kind: input, shape index: {}]
  %s5 = inlined_call_operand.hbm [shape: f32[2,5], index: 5, kind: output, shape index: {}]
  %s6 = sld [smem:[#allocation0]]
  $region34: #{tpu_custom_call.1} parent=0
    _
  %s8 = ssub.s32 1, %s6
  %s9 = scalar_select 0, %s8, %s6
  $region1: #{tpu_custom_call.1} parent=0
    #allocation2 [shape = 'u8[49152]{0}', space=vmem, size = 0xc000, scoped, tag = 'input window, operand 1, single buffered']
    #allocation3 [shape = 's32[1]{0}', space=sflag, size = 0x4, scoped, tag = 'scoped memory for tpu_custom_call.1']
    #allocation4 [shape = 's32[1]{0}', space=sflag, size = 0x4, scoped, tag = 'scoped memory for tpu_custom_call.1']
    #allocation5 [shape = 'u8[1024]{0}', space=vmem, size = 0x400, scoped, tag = 'output window, operand 0, single buffered']
    %10 = vsyncpa [#allocation3], 0
    %11 = vsyncpa [#allocation4], 0
    // Predicated region
    $region2: #{tpu_custom_call.1} parent=1 // pred_check
      _
    $region3: #{tpu_custom_call.1} parent=1 // pred_check_branch
      %13 = sbr.rel (0) target = $region5
    $region4: #{tpu_custom_call.1} parent=1 // pred_region
      _
    $region5: #{tpu_custom_call.1} parent=1 // pred_fallthru
      _
    // Predicated region
    $region6: #{tpu_custom_call.1} parent=1 // pred_check
      _
    $region7: #{tpu_custom_call.1} parent=1 // pred_check_branch
      %15 = sbr.rel (0) target = $region9
    $region8: #{tpu_custom_call.1} parent=1 // pred_region
      %17 = vsyncadd [#allocation3], 0
      %s18 = sshll.u32 %s1, 4
      %s19 = int_to_ptr.hbm [resolvable:$true] %s18
      %s20 = sshll.u32 [#allocation2], 4
      %s21 = int_to_ptr.vmem [resolvable:$true] %s20
      %26 = dma.hbm_to_vmem [thread:$0]  %s19, 1536, %s21, [#allocation3], 192, 192, 12
    $region9: #{tpu_custom_call.1} parent=1 // pred_fallthru
      _
    // Predicated region
    $region10: #{tpu_custom_call.1} parent=1 // pred_check
      _
    $region11: #{tpu_custom_call.1} parent=1 // pred_check_branch
      %28 = sbr.rel (0) target = $region13
    $region12: #{tpu_custom_call.1} parent=1 // pred_region
      _
    $region13: #{tpu_custom_call.1} parent=1 // pred_fallthru
      _
    // Predicated region
    $region14: #{tpu_custom_call.1} parent=1 // pred_check
      _
    $region15: #{tpu_custom_call.1} parent=1 // pred_check_branch
      %30 = sbr.rel (0) target = $region17
    $region16: #{tpu_custom_call.1} parent=1 // pred_region
      _
    $region17: #{tpu_custom_call.1} parent=1 // pred_fallthru
      _
    // Predicated region
    $region18: #{tpu_custom_call.1} parent=1 // pred_check
      _
    $region19: #{tpu_custom_call.1} parent=1 // pred_check_branch
      %32 = sbr.rel (0) target = $region21
    $region20: #{tpu_custom_call.1} parent=1 // pred_region
      _
    $region21: #{tpu_custom_call.1} parent=1 // pred_fallthru
      _
    // Predicated region
    $region22: #{tpu_custom_call.1} parent=1 // pred_check
      _
    $region23: #{tpu_custom_call.1} parent=1 // pred_check_branch
      %34 = sbr.rel (0) target = $region25
    $region24: #{tpu_custom_call.1} parent=1 // pred_region
      %36 = dma.done [#allocation3], 1536
    $region25: #{tpu_custom_call.1} parent=1 // pred_fallthru
      _
    %v38 = vld [vmem:[%s0] sm:$0x1]
    %v39 = vld [vmem:[#allocation2] sm:$0xff]
    %v40 = vld [vmem:[#allocation2 + $0x8] sm:$0xf]
    %v41 = vld [vmem:[#allocation2 + $0xc] sm:$0xff]
    %v42 = vld [vmem:[#allocation2 + $0x14] sm:$0xf]
    %v43 = vld [vmem:[#allocation2 + $0x18] sm:$0xff]
    %v44 = vld [vmem:[#allocation2 + $0x20] sm:$0xf]
    %v45 = vld [vmem:[#allocation2 + $0x24] sm:$0xff]
    %v46 = vld [vmem:[#allocation2 + $0x2c] sm:$0xf]
    %v47 = vld [vmem:[#allocation2 + $0x30] sm:$0xff]
    %v48 = vld [vmem:[#allocation2 + $0x38] sm:$0xf]
    %v49 = vld [vmem:[#allocation2 + $0x3c] sm:$0xff]
    %v50 = vld [vmem:[#allocation2 + $0x44] sm:$0xf]
    %v51 = vld [vmem:[#allocation2 + $0x48] sm:$0xff]
    %v52 = vld [vmem:[#allocation2 + $0x50] sm:$0xf]
    %v53 = vld [vmem:[#allocation2 + $0x54] sm:$0xff]
    %v54 = vld [vmem:[#allocation2 + $0x5c] sm:$0xf]
    %v55 = vld [vmem:[%s2] sm:$0x7]
    %v57 = vperm.slane %v55, 0
    %v58 = vperm.slane %v55, 1
    %v59 = vperm.slane %v55, 2
    %v79 = vunpack.c.l.b16 %v39
    %v80 = vunpack.c.h.b16 %v39
    %v81 = vunpack.c.l.b16 %v40
    %v82 = vunpack.c.l.b16 %v41
    %v83 = vunpack.c.h.b16 %v41
    %v84 = vunpack.c.l.b16 %v42
    %v85 = vunpack.c.l.b16 %v43
    %v86 = vunpack.c.h.b16 %v43
    %v87 = vunpack.c.l.b16 %v44
    %v88 = vunpack.c.l.b16 %v45
    %v89 = vunpack.c.h.b16 %v45
    %v90 = vunpack.c.l.b16 %v46
    %v91 = vunpack.c.l.b16 %v47
    %v92 = vunpack.c.h.b16 %v47
    %v93 = vunpack.c.l.b16 %v48
    %v94 = vunpack.c.l.b16 %v49
    %v95 = vunpack.c.h.b16 %v49
    %v96 = vunpack.c.l.b16 %v50
    %v97 = vunpack.c.l.b16 %v51
    %v98 = vunpack.c.h.b16 %v51
    %v99 = vunpack.c.l.b16 %v52
    %v100 = vunpack.c.l.b16 %v53
    %v101 = vunpack.c.h.b16 %v53
    %v102 = vunpack.c.l.b16 %v54
    %v103 = vpack.c.b16 %v82, %v79
    %v104 = vpack.c.b16 %v83, %v80
    %v105 = vpack.c.b16 %v84, %v81
    %v106 = vpack.c.b16 %v88, %v85
    %v107 = vpack.c.b16 %v89, %v86
    %v108 = vpack.c.b16 %v90, %v87
    %v109 = vpack.c.b16 %v94, %v91
    %v110 = vpack.c.b16 %v95, %v92
    %v111 = vpack.c.b16 %v96, %v93
    %v112 = vpack.c.b16 %v100, %v97
    %v113 = vpack.c.b16 %v101, %v98
    %v114 = vpack.c.b16 %v102, %v99
    %vm127 = vcmask 523264
    %v129 = vsel %vm127, %v38, 0
    %131 = vmatpush.bf16.msra.mxu0 0
    %132 = vmatpush.bf16.msra.mxu0 0
    %133 = vmatpush.bf16.msra.mxu0 0
    %134 = vmatpush.bf16.msra.mxu0 0
    %135 = vmatpush.bf16.msra.mxu0 %v112
    %136 = vmatpush.bf16.msra.mxu0 %v109
    %137 = vmatpush.bf16.msra.mxu0 %v106
    %138 = vmatpush.bf16.msra.mxu0 %v103
    %139 = vmatmul.bf16.gmra.mxu0 %v129
    %v140 = vpop.f32.mrf.mxu0
    %v141 = vadd.f32 %v57, %v140
    %v142 = vpop.f32.mrf.mxu0
    %143 = vdwg.mxu0
    %144 = vmatpush.bf16.msra.mxu0 0
    %145 = vmatpush.bf16.msra.mxu0 0
    %146 = vmatpush.bf16.msra.mxu0 0
    %147 = vmatpush.bf16.msra.mxu0 0
    %148 = vmatpush.bf16.msra.mxu0 %v113
    %149 = vmatpush.bf16.msra.mxu0 %v110
    %150 = vmatpush.bf16.msra.mxu0 %v107
    %151 = vmatpush.bf16.msra.mxu0 %v104
    %152 = vmatmul.bf16.gmra.mxu0 %v129
    %v153 = vpop.f32.mrf.mxu0
    %v154 = vadd.f32 %v58, %v153
    %v155 = vpop.f32.mrf.mxu0
    %156 = vdwg.mxu0
    %157 = vmatpush.bf16.msra.mxu0 0
    %158 = vmatpush.bf16.msra.mxu0 0
    %159 = vmatpush.bf16.msra.mxu0 0
    %160 = vmatpush.bf16.msra.mxu0 0
    %161 = vmatpush.bf16.msra.mxu0 %v114
    %162 = vmatpush.bf16.msra.mxu0 %v111
    %163 = vmatpush.bf16.msra.mxu0 %v108
    %164 = vmatpush.bf16.msra.mxu0 %v105
    %165 = vmatmul.bf16.gmra.mxu0 %v129
    %v166 = vpop.f32.mrf.mxu0
    %v167 = vadd.f32 %v59, %v166
    %v168 = vpop.f32.mrf.mxu0
    %169 = vdwg.mxu0
    %v170 = vmul.f32 %v141, 0.5
    %v171 = vtanh.pop %v170
    %v172 = vmul.f32 %v171, 0.5
    %v173 = vadd.f32 %v172, 0.5
    %v174 = vtanh.pop %v154
    %v175 = vmul.f32 %v167, 0.5
    %v176 = vtanh.pop %v175
    %v177 = vmul.f32 %v176, 0.5
    %v178 = vadd.f32 %v177, 0.5
    %v179 = vmul.f32 %v173, %v174
    %v180 = vtanh.pop %v179
    %v181 = vmul.f32 %v178, %v180
    %v182 = vpack.c.bf16 %v181, %v181
    %v183 = vld [vmem:[%s3] sm:$0xf]
    %v184 = vld [vmem:[%s3 + $0x4] sm:$0xf]
    %v185 = vld [vmem:[%s3 + $0x8] sm:$0xf]
    %v186 = vld [vmem:[%s3 + $0xc] sm:$0xf]
    %v187 = vld [vmem:[%s3 + $0x10] sm:$0xf]
    %v188 = vld [vmem:[%s3 + $0x14] sm:$0xf]
    %v189 = vld [vmem:[%s3 + $0x18] sm:$0xf]
    %v190 = vld [vmem:[%s3 + $0x1c] sm:$0xf]
    %v191 = vld [vmem:[%s3 + $0x20] sm:$0xf]
    %v192 = vld [vmem:[%s3 + $0x24] sm:$0xf]
    %v193 = vld [vmem:[%s3 + $0x28] sm:$0xf]
    %v194 = vld [vmem:[%s3 + $0x2c] sm:$0xf]
    %v195 = vld [vmem:[%s3 + $0x30] sm:$0xf]
    %v196 = vld [vmem:[%s3 + $0x34] sm:$0xf]
    %v197 = vld [vmem:[%s3 + $0x38] sm:$0xf]
    %v198 = vld [vmem:[%s3 + $0x3c] sm:$0xf]
    %v199 = vld [vmem:[%s4] sm:$0x1]
    %v201 = vperm.slane %v199, 0
    %v219 = vunpack.c.l.b16 %v183
    %v220 = vunpack.c.l.b16 %v184
    %v221 = vunpack.c.l.b16 %v185
    %v222 = vunpack.c.l.b16 %v186
    %v223 = vunpack.c.l.b16 %v187
    %v224 = vunpack.c.l.b16 %v188
    %v225 = vunpack.c.l.b16 %v189
    %v226 = vunpack.c.l.b16 %v190
    %v227 = vunpack.c.l.b16 %v191
    %v228 = vunpack.c.l.b16 %v192
    %v229 = vunpack.c.l.b16 %v193
    %v230 = vunpack.c.l.b16 %v194
    %v231 = vunpack.c.l.b16 %v195
    %v232 = vunpack.c.l.b16 %v196
    %v233 = vunpack.c.l.b16 %v197
    %v234 = vunpack.c.l.b16 %v198
    %v235 = vpack.c.b16 %v220, %v219
    %v236 = vpack.c.b16 %v222, %v221
    %v237 = vpack.c.b16 %v224, %v223
    %v238 = vpack.c.b16 %v226, %v225
    %v239 = vpack.c.b16 %v228, %v227
    %v240 = vpack.c.b16 %v230, %v229
    %v241 = vpack.c.b16 %v232, %v231
    %v242 = vpack.c.b16 %v234, %v233
    %251 = vmatpush.bf16.msra.mxu0 %v242
    %252 = vmatpush.bf16.msra.mxu0 %v241
    %253 = vmatpush.bf16.msra.mxu0 %v240
    %254 = vmatpush.bf16.msra.mxu0 %v239
    %255 = vmatpush.bf16.msra.mxu0 %v238
    %256 = vmatpush.bf16.msra.mxu0 %v237
    %257 = vmatpush.bf16.msra.mxu0 %v236
    %258 = vmatpush.bf16.msra.mxu0 %v235
    %259 = vmatmul.bf16.gmra.mxu0 %v182
    %v260 = vpop.f32.mrf.mxu0
    %v261 = vadd.f32 %v201, %v260
    %v262 = vpop.f32.mrf.mxu0
    %263 = vdwg.mxu0
    %vm264 = vcmask 33792
    %265 = vst.msk [vmem:[#allocation5] sm:$0x3] %vm264, %v261
    // Predicated region
    $region26: #{tpu_custom_call.1} parent=1 // pred_check
      _
    $region27: #{tpu_custom_call.1} parent=1 // pred_check_branch
      %267 = sbr.rel (0) target = $region29
    $region28: #{tpu_custom_call.1} parent=1 // pred_region
      %269 = vsyncadd [#allocation4], 0
      %s271 = sshll.u32 [#allocation5], 4
      %s272 = int_to_ptr.vmem [resolvable:$true] %s271
      %s273 = sshll.u32 %s5, 4
      %s274 = int_to_ptr.hbm [resolvable:$true] %s273
      %276 = dma.vmem_to_hbm [thread:$0]  %s272, 32, %s274, [#allocation4]
    $region29: #{tpu_custom_call.1} parent=1 // pred_fallthru
      _
    // Predicated region
    $region30: #{tpu_custom_call.1} parent=1 // pred_check
      _
    $region31: #{tpu_custom_call.1} parent=1 // pred_check_branch
      %278 = sbr.rel (0) target = $region33
    $region32: #{tpu_custom_call.1} parent=1 // pred_region
      %280 = dma.done [#allocation4], 32
    $region33: #{tpu_custom_call.1} parent=1 // pred_fallthru
      _
    %281 = vsyncpa [#allocation3], 1
    %282 = vsyncpa [#allocation4], 1

</llo_original>
